<compile_context>
chip_gen: v7x
topology: tpu7x:2x2x1
jax: 0.10.0
libtpu: 0.0.40
codegen_flags: <defaults>
</compile_context>

<pallas_src>
import math
import functools

import jax
import jax.numpy as jnp
from jax.experimental import pallas as pl
from jax.experimental.pallas import tpu as pltpu

LN_EPS = 1e-5      # torch F.layer_norm default
NEG_INF = -1e30    # finite mask value (avoids inf-inf NaN in online softmax)


# --------------------------------------------------------------------------
# Kernel 1: LayerNorm + fused QKV projection (scale pre-folded into Wq)
# --------------------------------------------------------------------------
def _ln_qkv_kernel(x_ref, gamma_ref, wqkv_ref, q_ref, k_ref, v_ref, *,
                   inner, dim_head, mxu_dtype):
    x = x_ref[...].astype(jnp.float32)                              # (rows, D)
    mean = jnp.mean(x, axis=-1, keepdims=True)
    var = jnp.mean(jnp.square(x - mean), axis=-1, keepdims=True)    # biased (torch)
    xn = (x - mean) * jax.lax.rsqrt(var + LN_EPS) * gamma_ref[0]
    qkv = jnp.dot(xn.astype(mxu_dtype), wqkv_ref[...],
                  preferred_element_type=jnp.float32)               # (rows, inner+2*Dh)
    q_ref[...] = qkv[:, :inner].astype(q_ref.dtype)
    k_ref[...] = qkv[:, inner:inner + dim_head].astype(k_ref.dtype)
    v_ref[...] = qkv[:, inner + dim_head:].astype(v_ref.dtype)


# --------------------------------------------------------------------------
# Kernel 2: flash attention (multi-query) + fused output projection
# --------------------------------------------------------------------------
def _flash_attn_kernel(q_ref, k_ref, v_ref, wo_ref, out_ref,
                       m_scr, l_scr, acc_scr, *,
                       heads, dim_head, q_tile, kv_tile, causal,
                       mxu_dtype, approx_recip):
    bb = q_ref.shape[0]
    inner = heads * dim_head
    qi = pl.program_id(1)
    ki = pl.program_id(2)
    nk = pl.num_programs(2)

    @pl.when(ki == 0)
    def _init():
        m_scr[...] = jnp.full(m_scr.shape, -jnp.inf, jnp.float32)
        l_scr[...] = jnp.zeros(l_scr.shape, jnp.float32)
        acc_scr[...] = jnp.zeros(acc_scr.shape, jnp.float32)

    def _process_tile():
        k_t = k_ref[...]                                 # (bb, T, Dh), mxu_dtype
        v_t = v_ref[...]
        if causal:
            # per-tile mask built in-loop (VPU work, hides under MXU/EUP)
            qpos = qi * q_tile + jax.lax.broadcasted_iota(
                jnp.int32, (q_tile, kv_tile), 0)
            kpos = ki * kv_tile + jax.lax.broadcasted_iota(
                jnp.int32, (q_tile, kv_tile), 1)
            mask = (qpos >= kpos)[None]                  # (1, tq, T)
        for h in range(heads):                           # static unroll, heads small
            # static lane slice of q; softmax scale already folded into Wq
            q_h = q_ref[:, :, h * dim_head:(h + 1) * dim_head]      # (bb, tq, Dh)
            s = jnp.einsum('bqd,bkd->bqk', q_h, k_t,
                           preferred_element_type=jnp.float32)      # (bb, tq, T)
            if causal:
                s = jnp.where(mask, s, NEG_INF)
            m_prev = m_scr[h]                                        # (bb, tq, 1)
            m_new = jnp.maximum(m_prev, jnp.max(s, axis=-1, keepdims=True))
            alpha = jnp.exp(m_prev - m_new)
            p = jnp.exp(s - m_new)
            l_scr[h] = alpha * l_scr[h] + jnp.sum(p, axis=-1, keepdims=True)
            acc_scr[h] = alpha * acc_scr[h] + jnp.einsum(
                'bqk,bkd->bqd', p.astype(mxu_dtype), v_t,
                preferred_element_type=jnp.float32)
            m_scr[h] = m_new

    if causal:
        # skip kv tiles entirely above the diagonal (saves MXU + exp work;
        # the first kv tile is never skipped, so m/l stay well defined).
        pl.when(ki * kv_tile < (qi + 1) * q_tile)(_process_tile)
    else:
        _process_tile()

    @pl.when(ki == nk - 1)
    def _finalize():
        parts = []
        for h in range(heads):
            inv_l = pl.reciprocal(l_scr[h], approx=approx_recip)    # EUP slot
            parts.append(acc_scr[h] * inv_l)                        # (bb, tq, Dh)
        om = jnp.concatenate(parts, axis=-1)                        # (bb, tq, inner)
        om2 = om.reshape(bb * q_tile, inner).astype(mxu_dtype)
        # single inner-deep Wo matmul (instead of H shallow per-head partials)
        out2 = jnp.dot(om2, wo_ref[...], preferred_element_type=jnp.float32)
        out_ref[...] = out2.reshape(out_ref.shape).astype(out_ref.dtype)


# --------------------------------------------------------------------------
# Wrapper
# --------------------------------------------------------------------------
def attention_forward(x, gamma, wq, wkv, wo, *, heads, dim_head, causal=False,
                      b_block=1, q_tile=None, kv_tile=None, row_block=None,
                      mxu_dtype=jnp.bfloat16, approx_recip=None,
                      kv_buffers=None, vmem_limit_bytes=32 * 1024 * 1024):
    """x: (B, N, D).  Weights stored transposed vs torch nn.Linear:
    wq (D, H*Dh), wkv (D, 2*Dh), wo (H*Dh, D).  Returns (B, N, D)."""
    B, N, D = x.shape
    inner = heads * dim_head
    assert wq.shape == (D, inner) and wkv.shape == (D, 2 * dim_head)
    assert wo.shape == (inner, D) and gamma.shape == (D,)

    if approx_recip is None:
        approx_recip = jnp.dtype(mxu_dtype) != jnp.dtype(jnp.float32)

    # ---- tiling choices ---------------------------------------------------
    if q_tile is None:
        q_tile = N if N <= 256 else 256
        if N % q_tile:
            q_tile = N
    if kv_tile is None:
        kv_tile = N if N <= 512 else 512
        if N % kv_tile:
            kv_tile = N
    assert B % b_block == 0, "b_block must divide batch"
    assert N % q_tile == 0 and (q_tile % 8 == 0 or q_tile == N)
    assert N % kv_tile == 0 and (kv_tile % 8 == 0 or kv_tile == N)

    total_rows = B * N
    if row_block is None:
        row_block = total_rows if total_rows <= 256 else math.gcd(total_rows, 256)
    if row_block % 8 != 0:
        row_block = total_rows
    assert total_rows % row_block == 0

    # softmax scale folded into Wq; single fused QKV weight (one MXU pass,
    # one resident weight DMA).
    scale = dim_head ** -0.5
    wqkv = jnp.concatenate([wq * scale, wkv], axis=-1).astype(mxu_dtype)
    wo_m = wo.astype(mxu_dtype)
    gamma2 = gamma.reshape(1, D).astype(jnp.float32)

    # ---- pass 1: LayerNorm + fused QKV projection --------------------------
    proj_kernel = functools.partial(_ln_qkv_kernel, inner=inner,
                                    dim_head=dim_head, mxu_dtype=mxu_dtype)
    q2, k2, v2 = pl.pallas_call(
        proj_kernel,
        out_shape=(jax.ShapeDtypeStruct((total_rows, inner), mxu_dtype),
                   jax.ShapeDtypeStruct((total_rows, dim_head), mxu_dtype),
                   jax.ShapeDtypeStruct((total_rows, dim_head), mxu_dtype)),
        grid=(total_rows // row_block,),
        in_specs=[
            pl.BlockSpec((row_block, D), lambda r: (r, 0)),
            pl.BlockSpec((1, D), lambda r: (0, 0)),                    # gamma (resident)
            pl.BlockSpec((D, inner + 2 * dim_head), lambda r: (0, 0)),  # Wqkv  (resident)
        ],
        out_specs=(pl.BlockSpec((row_block, inner), lambda r: (r, 0)),
                   pl.BlockSpec((row_block, dim_head), lambda r: (r, 0)),
                   pl.BlockSpec((row_block, dim_head), lambda r: (r, 0))),
        compiler_params=pltpu.CompilerParams(
            dimension_semantics=("parallel",),
            vmem_limit_bytes=vmem_limit_bytes),
    )(x.reshape(total_rows, D), gamma2, wqkv)

    q = q2.reshape(B, N, inner)
    k = k2.reshape(B, N, dim_head)
    v = v2.reshape(B, N, dim_head)

    # ---- pass 2: flash attention + output projection ------------------------
    nq = N // q_tile
    nk = N // kv_tile
    # lane-dense merged store only pays when D < 128 (avoids masked vst.msk).
    merge_lanes = (D % 128 != 0) and ((q_tile * D) % 128 == 0)
    if merge_lanes:
        out_shape = jax.ShapeDtypeStruct((B, nq, 1, q_tile * D), x.dtype)
        out_spec = pl.BlockSpec((b_block, 1, 1, q_tile * D),
                                lambda b, qi, ki: (b, qi, 0, 0))
    else:
        out_shape = jax.ShapeDtypeStruct((B, N, D), x.dtype)
        out_spec = pl.BlockSpec((b_block, q_tile, D),
                                lambda b, qi, ki: (b, qi, 0))

    kv_kwargs = {} if kv_buffers is None else {"pipeline_mode": pl.Buffered(kv_buffers)}
    attn_kernel = functools.partial(
        _flash_attn_kernel, heads=heads, dim_head=dim_head, q_tile=q_tile,
        kv_tile=kv_tile, causal=causal, mxu_dtype=mxu_dtype,
        approx_recip=approx_recip)

    out = pl.pallas_call(
        attn_kernel,
        out_shape=out_shape,
        grid=(B // b_block, nq, nk),
        in_specs=[
            pl.BlockSpec((b_block, q_tile, inner), lambda b, qi, ki: (b, qi, 0)),
            pl.BlockSpec((b_block, kv_tile, dim_head),
                         lambda b, qi, ki: (b, ki, 0), **kv_kwargs),
            pl.BlockSpec((b_block, kv_tile, dim_head),
                         lambda b, qi, ki: (b, ki, 0), **kv_kwargs),
            pl.BlockSpec((inner, D), lambda b, qi, ki: (0, 0)),          # Wo (resident)
        ],
        out_specs=out_spec,
        scratch_shapes=[
            pltpu.VMEM((heads, b_block, q_tile, 1), jnp.float32),        # m
            pltpu.VMEM((heads, b_block, q_tile, 1), jnp.float32),        # l
            pltpu.VMEM((heads, b_block, q_tile, dim_head), jnp.float32), # acc
        ],
        compiler_params=pltpu.CompilerParams(
            dimension_semantics=("parallel", "parallel", "arbitrary"),
            vmem_limit_bytes=vmem_limit_bytes),
    )(q, k, v, wo_m)

    if merge_lanes:
        out = out.reshape(B, N, D)
    return out


# --------------------------------------------------------------------------
# Pure-JAX reference mirroring the PyTorch forward (eval mode)
# --------------------------------------------------------------------------
def attention_reference(x, gamma, wq, wkv, wo, *, heads, dim_head, causal=False):
    mean = jnp.mean(x, axis=-1, keepdims=True)
    var = jnp.mean((x - mean) ** 2, axis=-1, keepdims=True)
    xn = (x - mean) / jnp.sqrt(var + LN_EPS) * gamma
    q = xn @ wq
    kv = xn @ wkv
    k, v = kv[..., :dim_head], kv[..., dim_head:]
    B, N, _ = x.shape
    q = q.reshape(B, N, heads, dim_head).transpose(0, 2, 1, 3)          # b h n d
    sim = jnp.einsum('bhid,bjd->bhij', q, k) * (dim_head ** -0.5)
    if causal:
        i = jnp.arange(N)[:, None]
        j = jnp.arange(N)[None, :]
        sim = jnp.where(i >= j, sim, -jnp.inf)
    attn = jax.nn.softmax(sim, axis=-1)
    o = jnp.einsum('bhij,bjd->bhid', attn, v)
    o = o.transpose(0, 2, 1, 3).reshape(B, N, heads * dim_head)
    return o @ wo


if __name__ == "__main__":
    # Shapes consistent with the module: Attention(dim=32, heads=4, dim_head=16)
    heads, dim_head = 4, 16
    D = 32
    inner = heads * dim_head

    key = jax.random.PRNGKey(0)
    kx, kq, kkv, ko, kx2 = jax.random.split(key, 5)

    gamma = jnp.ones((D,), dtype=jnp.float32)                      # LayerNorm gamma init
    wq = jax.random.normal(kq, (D, inner), jnp.float32) * (1.0 / math.sqrt(D))
    wkv = jax.random.normal(kkv, (D, 2 * dim_head), jnp.float32) * (1.0 / math.sqrt(D))
    wo = jax.random.normal(ko, (inner, D), jnp.float32) * (1.0 / math.sqrt(inner))

    # 1) toy module shapes, f32 MXU operands, exact reciprocal, non-causal.
    #    (tolerance allows for reduced-precision f32 MXU passes on some chips)
    B, N = 2, 8
    x = jax.random.normal(kx, (B, N, D), jnp.float32)
    out = attention_forward(x, gamma, wq, wkv, wo, heads=heads, dim_head=dim_head,
                            causal=False, mxu_dtype=jnp.float32, approx_recip=False)
    out = jax.block_until_ready(out)
    with jax.default_matmul_precision("highest"):
        ref = attention_reference(x, gamma, wq, wkv, wo,
                                  heads=heads, dim_head=dim_head, causal=False)
    assert out.shape == (B, N, D)
    assert bool(jnp.allclose(out, ref, atol=2e-2, rtol=2e-2)), "f32 mismatch (toy)"

    # 2) causal self-attention (Transformer self-attn layers) with a real
    #    multi-tile grid: batch x q-tiles x kv-tiles = (2, 2, 2); exercises
    #    the VMEM-scratch online softmax, causal tile skip and pipelined K/V.
    B2, N2 = 2, 256
    x2 = jax.random.normal(kx2, (B2, N2, D), jnp.float32)
    out2 = attention_forward(x2, gamma, wq, wkv, wo, heads=heads, dim_head=dim_head,
                             causal=True, b_block=1, q_tile=128, kv_tile=128,
                             mxu_dtype=jnp.float32, approx_recip=False)
    out2 = jax.block_until_ready(out2)
    with jax.default_matmul_precision("highest"):
        ref2 = attention_reference(x2, gamma, wq, wkv, wo,
                                   heads=heads, dim_head=dim_head, causal=True)
    assert out2.shape == (B2, N2, D)
    assert bool(jnp.allclose(out2, ref2, atol=2e-2, rtol=2e-2)), "f32 mismatch (tiled)"

    # 3) production-style path: bf16 MXU operands + approximate EUP reciprocal
    #    (f32 LayerNorm / softmax statistics and accumulators), causal, tiled.
    out3 = attention_forward(x2, gamma, wq, wkv, wo, heads=heads, dim_head=dim_head,
                             causal=True, b_block=1, q_tile=128, kv_tile=128,
                             mxu_dtype=jnp.bfloat16)
    out3 = jax.block_until_ready(out3)
    assert out3.shape == (B2, N2, D)
    assert bool(jnp.all(jnp.isfinite(out3)))
    assert bool(jnp.allclose(out3, ref2, atol=6e-2, rtol=6e-2)), "bf16 mismatch"

    print("KERNEL_OK")
</pallas_src>

<mosaic_0001>
module attributes {stable_mosaic.version = 11 : i64} {
  func.func @_ln_qkv_kernel(%arg0: i32, %arg1: memref<16x32xf32, #tpu.memory_space<vmem>>, %arg2: memref<1x32xf32, #tpu.memory_space<vmem>>, %arg3: memref<32x96xf32, #tpu.memory_space<vmem>>, %arg4: memref<16x64xf32, #tpu.memory_space<vmem>>, %arg5: memref<16x16xf32, #tpu.memory_space<vmem>>, %arg6: memref<16x16xf32, #tpu.memory_space<vmem>>) attributes {dimension_semantics = [#tpu.dimension_semantics<parallel>], iteration_bounds = array<i64: 1>, scalar_prefetch = 0 : i64, scratch_operands = 0 : i64, tpu.core_type = #tpu.core_type<tc>, window_params = [{transform_indices = @transform_0, window_bounds = array<i64: 16, 32>}, {pipeline_mode = #tpu.pipeline_mode<synchronous>, transform_indices = @transform_1, window_bounds = array<i64: 1, 32>}, {pipeline_mode = #tpu.pipeline_mode<synchronous>, transform_indices = @transform_2, window_bounds = array<i64: 32, 96>}, {transform_indices = @transform_3, window_bounds = array<i64: 16, 64>}, {transform_indices = @transform_4, window_bounds = array<i64: 16, 16>}, {transform_indices = @transform_5, window_bounds = array<i64: 16, 16>}]} {
    %c0 = arith.constant 0 : index
    %c0_0 = arith.constant 0 : index
    %0 = vector.load %arg1[%c0, %c0_0] : memref<16x32xf32, #tpu.memory_space<vmem>>, vector<16x32xf32>
    %cst = arith.constant dense<0.000000e+00> : vector<16xf32>
    %1 = vector.multi_reduction <add>, %0, %cst [1] : vector<16x32xf32> to vector<16xf32>
    %2 = vector.shape_cast %1 : vector<16xf32> to vector<16x1xf32>
    %cst_1 = arith.constant 3.200000e+01 : f32
    %3 = vector.broadcast %cst_1 : f32 to vector<16x1xf32>
    %4 = arith.divf %2, %3 : vector<16x1xf32>
    %5 = vector.broadcast %4 : vector<16x1xf32> to vector<16x32xf32>
    %6 = arith.subf %0, %5 : vector<16x32xf32>
    %7 = arith.mulf %6, %6 : vector<16x32xf32>
    %cst_2 = arith.constant dense<0.000000e+00> : vector<16xf32>
    %8 = vector.multi_reduction <add>, %7, %cst_2 [1] : vector<16x32xf32> to vector<16xf32>
    %9 = vector.shape_cast %8 : vector<16xf32> to vector<16x1xf32>
    %cst_3 = arith.constant 3.200000e+01 : f32
    %10 = vector.broadcast %cst_3 : f32 to vector<16x1xf32>
    %11 = arith.divf %9, %10 : vector<16x1xf32>
    %12 = vector.broadcast %4 : vector<16x1xf32> to vector<16x32xf32>
    %13 = arith.subf %0, %12 : vector<16x32xf32>
    %cst_4 = arith.constant 9.99999974E-6 : f32
    %14 = vector.broadcast %cst_4 : f32 to vector<16x1xf32>
    %15 = arith.addf %11, %14 : vector<16x1xf32>
    %16 = math.rsqrt %15 : vector<16x1xf32>
    %17 = vector.broadcast %16 : vector<16x1xf32> to vector<16x32xf32>
    %18 = arith.mulf %13, %17 : vector<16x32xf32>
    %c0_5 = arith.constant 0 : index
    %c0_6 = arith.constant 0 : index
    %19 = vector.load %arg2[%c0_5, %c0_6] : memref<1x32xf32, #tpu.memory_space<vmem>>, vector<1x32xf32>
    %20 = vector.shape_cast %19 : vector<1x32xf32> to vector<32xf32>
    %21 = vector.shape_cast %20 : vector<32xf32> to vector<1x32xf32>
    %22 = vector.broadcast %21 : vector<1x32xf32> to vector<16x32xf32>
    %23 = arith.mulf %18, %22 : vector<16x32xf32>
    %c0_7 = arith.constant 0 : index
    %c0_8 = arith.constant 0 : index
    %24 = vector.load %arg3[%c0_7, %c0_8] : memref<32x96xf32, #tpu.memory_space<vmem>>, vector<32x96xf32>
    %cst_9 = arith.constant dense<0.000000e+00> : vector<16x96xf32>
    %25 = tpu.matmul %23, %24, %cst_9 {dimension_numbers = #tpu.dot_dimension_numbers<[1], [0], [0], [1], [0, 0, 1, 1], [], []>} : vector<16x32xf32>, vector<32x96xf32>, vector<16x96xf32> -> vector<16x96xf32>
    %26 = vector.extract_strided_slice %25 {offsets = [0, 0], sizes = [16, 64], strides = [1, 1]} : vector<16x96xf32> to vector<16x64xf32>
    %c0_10 = arith.constant 0 : index
    %c0_11 = arith.constant 0 : index
    %27 = vector.load %arg4[%c0_10, %c0_11] : memref<16x64xf32, #tpu.memory_space<vmem>>, vector<16x64xf32>
    tpu.vector_store %arg4[%c0_10, %c0_11], %26 {strides = array<i32>} : memref<16x64xf32, #tpu.memory_space<vmem>>, vector<16x64xf32>,
    %28 = vector.extract_strided_slice %25 {offsets = [0, 64], sizes = [16, 16], strides = [1, 1]} : vector<16x96xf32> to vector<16x16xf32>
    %c0_12 = arith.constant 0 : index
    %c0_13 = arith.constant 0 : index
    %29 = vector.load %arg5[%c0_12, %c0_13] : memref<16x16xf32, #tpu.memory_space<vmem>>, vector<16x16xf32>
    tpu.vector_store %arg5[%c0_12, %c0_13], %28 {strides = array<i32>} : memref<16x16xf32, #tpu.memory_space<vmem>>, vector<16x16xf32>,
    %30 = vector.extract_strided_slice %25 {offsets = [0, 80], sizes = [16, 16], strides = [1, 1]} : vector<16x96xf32> to vector<16x16xf32>
    %c0_14 = arith.constant 0 : index
    %c0_15 = arith.constant 0 : index
    %31 = vector.load %arg6[%c0_14, %c0_15] : memref<16x16xf32, #tpu.memory_space<vmem>>, vector<16x16xf32>
    tpu.vector_store %arg6[%c0_14, %c0_15], %30 {strides = array<i32>} : memref<16x16xf32, #tpu.memory_space<vmem>>, vector<16x16xf32>,
    return
  }
  func.func @transform_0(%arg0: i32) -> (i32, i32) {
    %c0_i32 = arith.constant 0 : i32
    %c0_i32_0 = arith.constant 0 : i32
    return %arg0, %c0_i32 : i32, i32
  }
  func.func @transform_1(%arg0: i32) -> (i32, i32) {
    %c0_i32 = arith.constant 0 : i32
    %c0_i32_0 = arith.constant 0 : i32
    %c0_i32_1 = arith.constant 0 : i32
    return %c0_i32, %c0_i32_0 : i32, i32
  }
  func.func @transform_2(%arg0: i32) -> (i32, i32) {
    %c0_i32 = arith.constant 0 : i32
    %c0_i32_0 = arith.constant 0 : i32
    %c0_i32_1 = arith.constant 0 : i32
    return %c0_i32, %c0_i32_0 : i32, i32
  }
  func.func @transform_3(%arg0: i32) -> (i32, i32) {
    %c0_i32 = arith.constant 0 : i32
    %c0_i32_0 = arith.constant 0 : i32
    return %arg0, %c0_i32 : i32, i32
  }
  func.func @transform_4(%arg0: i32) -> (i32, i32) {
    %c0_i32 = arith.constant 0 : i32
    %c0_i32_0 = arith.constant 0 : i32
    return %arg0, %c0_i32 : i32, i32
  }
  func.func @transform_5(%arg0: i32) -> (i32, i32) {
    %c0_i32 = arith.constant 0 : i32
    %c0_i32_0 = arith.constant 0 : i32
    return %arg0, %c0_i32 : i32, i32
  }
}

</mosaic_0001>

<llo_original>
// kernel: tpu_custom_call.1
$region0: #{tpu_custom_call.1}
  #allocation0 [shape = 'u32[]', space=smem, size = 0x4, offset = 0x4, fixed_abs, tag = 'smem constant byte address 0x4 - core index']
  #allocation1 [shape = 'u32[144,128]{1,0:T(1,128)}', space=vmem, size = 0x12000, scoped, tag = 'internal scratch']
  %s0 = inlined_call_operand.hbm [shape: f32[16,32], index: 0, kind: input, shape index: {}]
  %s1 = inlined_call_operand.vmem [shape: f32[1,32], index: 1, kind: input, shape index: {}]
  %s2 = inlined_call_operand.hbm [shape: f32[32,96], index: 2, kind: input, shape index: {}]
  %s3 = inlined_call_operand.hbm [shape: f32[16,64], index: 3, kind: output, shape index: {0}]
  %s4 = inlined_call_operand.hbm [shape: f32[16,16], index: 4, kind: output, shape index: {1}]
  %s5 = inlined_call_operand.hbm [shape: f32[16,16], index: 5, kind: output, shape index: {2}]
  %6 = xla_tuple %s3, %s4, %s5
  %s7 = sld [smem:[#allocation0]]
  $region46: #{tpu_custom_call.1} parent=0
    _
  %s9 = ssub.s32 1, %s7
  %s10 = scalar_select 0, %s9, %s7
  $region1: #{tpu_custom_call.1} parent=0
    #allocation2 [shape = 'u8[8192]{0}', space=vmem, size = 0x2000, scoped, tag = 'input window, operand 0, single buffered']
    #allocation3 [shape = 's32[1]{0}', space=sflag, size = 0x4, scoped, tag = 'scoped memory for tpu_custom_call.1']
    #allocation4 [shape = 's32[1]{0}', space=sflag, size = 0x4, scoped, tag = 'scoped memory for tpu_custom_call.1']
    #allocation5 [shape = 'u8[16384]{0}', space=vmem, size = 0x4000, scoped, tag = 'input window, operand 2, single buffered']
    #allocation6 [shape = 's32[1]{0}', space=sflag, size = 0x4, scoped, tag = 'scoped memory for tpu_custom_call.1']
    #allocation7 [shape = 'u8[8192]{0}', space=vmem, size = 0x2000, scoped, tag = 'output window, operand 0, single buffered']
    #allocation8 [shape = 'u8[8192]{0}', space=vmem, size = 0x2000, scoped, tag = 'output window, operand 1, single buffered']
    #allocation9 [shape = 's32[1]{0}', space=sflag, size = 0x4, scoped, tag = 'scoped memory for tpu_custom_call.1']
    #allocation10 [shape = 'u8[8192]{0}', space=vmem, size = 0x2000, scoped, tag = 'output window, operand 2, single buffered']
    %11 = vsyncpa [#allocation3], 0
    %12 = vsyncpa [#allocation6], 0
    %13 = vsyncpa [#allocation4], 0
    %14 = vsyncpa [#allocation9], 0
    // Predicated region
    $region2: #{tpu_custom_call.1} parent=1 // pred_check
      _
    $region3: #{tpu_custom_call.1} parent=1 // pred_check_branch
      %16 = sbr.rel (0) target = $region5
    $region4: #{tpu_custom_call.1} parent=1 // pred_region
      %s18 = ssub.s32 256, 256
      %19 = vsyncadd [#allocation3], %s18
      %s20 = sshll.u32 [#allocation2], 4
      %s21 = int_to_ptr.vmem [resolvable:$true] %s20
      %26 = dma.hbm_to_vmem [thread:$0]  %s0, 256, %s21, [#allocation3], 128, 128, 8
    $region5: #{tpu_custom_call.1} parent=1 // pred_fallthru
      _
    // Predicated region
    $region6: #{tpu_custom_call.1} parent=1 // pred_check
      _
    $region7: #{tpu_custom_call.1} parent=1 // pred_check_branch
      %28 = sbr.rel (0) target = $region9
    $region8: #{tpu_custom_call.1} parent=1 // pred_region
      _
    $region9: #{tpu_custom_call.1} parent=1 // pred_fallthru
      _
    // Predicated region
    $region10: #{tpu_custom_call.1} parent=1 // pred_check
      _
    $region11: #{tpu_custom_call.1} parent=1 // pred_check_branch
      %30 = sbr.rel (0) target = $region13
    $region12: #{tpu_custom_call.1} parent=1 // pred_region
      %s32 = ssub.s32 512, 512
      %33 = vsyncadd [#allocation6], %s32
      %s34 = sshll.u32 [#allocation5], 4
      %s35 = int_to_ptr.vmem [resolvable:$true] %s34
      %40 = dma.hbm_to_vmem [thread:$0]  %s2, 512, %s35, [#allocation6], 128, 128, 8
    $region13: #{tpu_custom_call.1} parent=1 // pred_fallthru
      _
    // Predicated region
    $region14: #{tpu_custom_call.1} parent=1 // pred_check
      _
    $region15: #{tpu_custom_call.1} parent=1 // pred_check_branch
      %42 = sbr.rel (0) target = $region17
    $region16: #{tpu_custom_call.1} parent=1 // pred_region
      %43 = dma.done [#allocation3], 256
    $region17: #{tpu_custom_call.1} parent=1 // pred_fallthru
      _
    // Predicated region
    $region18: #{tpu_custom_call.1} parent=1 // pred_check
      _
    $region19: #{tpu_custom_call.1} parent=1 // pred_check_branch
      %45 = sbr.rel (0) target = $region21
    $region20: #{tpu_custom_call.1} parent=1 // pred_region
      %46 = dma.done [#allocation6], 512
    $region21: #{tpu_custom_call.1} parent=1 // pred_fallthru
      _
    %v47 = vld [vmem:[#allocation2] sm:$0xff]
    %v48 = vld [vmem:[#allocation2 + $0x8] sm:$0xff]
    %vm49 = vcmask 261120
    %v50 = vsel %vm49, %v47, 0.0
    %51 = vadd.xlane.f32.xlu0 %v50
    %v52 = vpop.xlane.xlu0 %51
    %v53 = vsel %vm49, %v48, 0.0
    %54 = vadd.xlane.f32.xlu0 %v53
    %v55 = vpop.xlane.xlu0 %54
    %v56 = vrcp.pop 32.0
    %v57 = vmul.f32 %v52, %v56
    %v58 = vmul.f32 %v55, %v56
    %v59 = vsub.f32 %v47, %v57
    %v60 = vsub.f32 %v48, %v58
    %v61 = vmul.f32 %v59, %v59
    %v62 = vmul.f32 %v60, %v60
    %v63 = vsel %vm49, %v61, 0.0
    %64 = vadd.xlane.f32.xlu0 %v63
    %v65 = vpop.xlane.xlu0 %64
    %v66 = vsel %vm49, %v62, 0.0
    %67 = vadd.xlane.f32.xlu0 %v66
    %v68 = vpop.xlane.xlu0 %67
    %v69 = vmul.f32 %v65, %v56
    %v70 = vmul.f32 %v68, %v56
    %v71 = vadd.f32 %v69, 1e-05
    %v72 = vadd.f32 %v70, 1e-05
    %v73 = vrsqrt.pop %v71
    %v74 = vrsqrt.pop %v72
    %v75 = vmul.f32 %v59, %v73
    %v76 = vmul.f32 %v60, %v74
    %v77 = vld [vmem:[%s1] sm:$0x1]
    %v79 = vlaneseq
    %v80 = vshrl.u32 %v79, 7
    %v81 = vsub.s32 0, %v80
    %v82 = vrot.slane %v77, %v81
    %v84 = vmul.f32 %v75, %v82
    %v85 = vmul.f32 %v76, %v82
    %v86 = vld [vmem:[#allocation5] sm:$0xff]
    %v87 = vld [vmem:[#allocation5 + $0x8] sm:$0xff]
    %v88 = vld [vmem:[#allocation5 + $0x10] sm:$0xff]
    %v89 = vld [vmem:[#allocation5 + $0x18] sm:$0xff]
    %v91 = vsel %vm49, %v84, 0
    %v94 = vsel %vm49, %v85, 0
    %96 = vmatprep.subr.mxu0 0.0
    %97 = vmatpush1.msra.mxu0 %v86
    %98 = vmatprep.subr.mxu0 0.0
    %99 = vmatpush1.msra.mxu0 %v87
    %100 = vmatprep.subr.mxu0 0.0
    %101 = vmatpush1.msra.mxu0 %v88
    %102 = vmatprep.subr.mxu0 0.0
    %103 = vmatpush1.msra.mxu0 %v89
    %104 = vmatprep.subr.mxu0 0.0
    %105 = vmatpush1.msra.mxu0 0.0
    %106 = vmatprep.subr.mxu0 0.0
    %107 = vmatpush1.msra.mxu0 0.0
    %108 = vmatprep.subr.mxu0 0.0
    %109 = vmatpush1.msra.mxu0 0.0
    %110 = vmatprep.subr.mxu0 0.0
    %111 = vmatpush1.msra.mxu0 0.0
    %112 = vmatprep.subr.mxu0 0.0
    %113 = vmatpush1.msra.mxu0 0.0
    %114 = vmatprep.subr.mxu0 0.0
    %115 = vmatpush1.msra.mxu0 0.0
    %116 = vmatprep.subr.mxu0 0.0
    %117 = vmatpush1.msra.mxu0 0.0
    %118 = vmatprep.subr.mxu0 0.0
    %119 = vmatpush1.msra.mxu0 0.0
    %120 = vmatprep.subr.mxu0 0.0
    %121 = vmatpush1.msra.mxu0 0.0
    %122 = vmatprep.subr.mxu0 0.0
    %123 = vmatpush1.msra.mxu0 0.0
    %124 = vmatprep.subr.mxu0 0.0
    %125 = vmatpush1.msra.mxu0 0.0
    %126 = vmatprep.subr.mxu0 0.0
    %127 = vmatpush1.msra.mxu0 0.0
    %128 = vmatprep.subr.mxu0 0.0
    %129 = vmatpush1.msra.mxu0 0.0
    %130 = vmatprep.subr.mxu0 0.0
    %131 = vmatpush1.msra.mxu0 0.0
    %132 = vmatprep.subr.mxu0 0.0
    %133 = vmatpush1.msra.mxu0 0.0
    %134 = vmatprep.subr.mxu0 0.0
    %135 = vmatpush1.msra.mxu0 0.0
    %136 = vmatprep.subr.mxu0 0.0
    %137 = vmatpush1.msra.mxu0 0.0
    %138 = vmatprep.subr.mxu0 0.0
    %139 = vmatpush1.msra.mxu0 0.0
    %140 = vmatprep.subr.mxu0 0.0
    %141 = vmatpush1.msra.mxu0 0.0
    %142 = vmatprep.subr.mxu0 0.0
    %143 = vmatpush1.msra.mxu0 0.0
    %144 = vmatprep.subr.mxu0 0.0
    %145 = vmatpush1.msra.mxu0 0.0
    %146 = vmatprep.subr.mxu0 0.0
    %147 = vmatpush1.msra.mxu0 0.0
    %148 = vmatprep.subr.mxu0 0.0
    %149 = vmatpush1.msra.mxu0 0.0
    %150 = vmatprep.subr.mxu0 0.0
    %151 = vmatpush1.msra.mxu0 0.0
    %152 = vmatprep.subr.mxu0 0.0
    %153 = vmatpush1.msra.mxu0 0.0
    %154 = vmatprep.subr.mxu0 0.0
    %155 = vmatpush1.msra.mxu0 0.0
    %156 = vmatprep.subr.mxu0 0.0
    %157 = vmatpush1.msra.mxu0 0.0
    %158 = vmatprep.subr.mxu0 0.0
    %159 = vmatpush1.msra.mxu0 0.0
    %160 = vmatprep.mubr.f32.mxu0 0.0
    %161 = vmatmul.mubr.f32.gmra.mrb[0].mxu0 %v91
    %v162 = vpop.f32.mrb[0].mxu0
    %v163 = vadd.f32 0.0, %v162
    %v164 = vpop.f32.mrb[0].mxu0
    %165 = vmatprep.mubr.f32.mxu0 0.0
    %166 = vmatmul.mubr.f32.gmra.mrb[0].mxu0 %v94
    %v167 = vpop.f32.mrb[0].mxu0
    %v168 = vadd.f32 0.0, %v167
    %v169 = vpop.f32.mrb[0].mxu0
    %170 = vdwg.mxu0
    %vm171 = vcmask 523264
    %172 = vst.msk [vmem:[#allocation7] sm:$0xff] %vm171, %v163
    %173 = vst.msk [vmem:[#allocation7 + $0x8] sm:$0xff] %vm171, %v168
    %176 = vrot.lane.b32.xlu0 %v163, 64
    %v177 = vpop.permute.xlu0 %176
    %178 = vrot.lane.b32.xlu0 %v168, 64
    %v179 = vpop.permute.xlu0 %178
    %vm182 = vcmask 130048
    %183 = vst.msk [vmem:[#allocation8] sm:$0xff] %vm182, %v177
    %184 = vst.msk [vmem:[#allocation8 + $0x8] sm:$0xff] %vm182, %v179
    %185 = vrot.lane.b32.xlu0 %v163, 48
    %v186 = vpop.permute.xlu0 %185
    %187 = vrot.lane.b32.xlu0 %v168, 48
    %v188 = vpop.permute.xlu0 %187
    %191 = vst.msk [vmem:[#allocation10] sm:$0xff] %vm182, %v186
    %192 = vst.msk [vmem:[#allocation10 + $0x8] sm:$0xff] %vm182, %v188
    // Predicated region
    $region22: #{tpu_custom_call.1} parent=1 // pred_check
      _
    $region23: #{tpu_custom_call.1} parent=1 // pred_check_branch
      %194 = sbr.rel (0) target = $region25
    $region24: #{tpu_custom_call.1} parent=1 // pred_region
      %s196 = ssub.s32 256, 256
      %197 = vsyncadd [#allocation4], %s196
      %s198 = sshll.u32 [#allocation7], 4
      %s199 = int_to_ptr.vmem [resolvable:$true] %s198
      %204 = dma.vmem_to_hbm [thread:$0]  %s199, 256, %s3, [#allocation4], 128, 128, 8
    $region25: #{tpu_custom_call.1} parent=1 // pred_fallthru
      _
    // Predicated region
    $region26: #{tpu_custom_call.1} parent=1 // pred_check
      _
    $region27: #{tpu_custom_call.1} parent=1 // pred_check_branch
      %206 = sbr.rel (0) target = $region29
    $region28: #{tpu_custom_call.1} parent=1 // pred_region
      %s208 = ssub.s32 256, 256
      %209 = vsyncadd [#allocation9], %s208
      %s210 = sshll.u32 [#allocation8], 4
      %s211 = int_to_ptr.vmem [resolvable:$true] %s210
      %216 = dma.vmem_to_hbm [thread:$0]  %s211, 256, %s4, [#allocation9], 128, 128, 8
    $region29: #{tpu_custom_call.1} parent=1 // pred_fallthru
      _
    // Predicated region
    $region30: #{tpu_custom_call.1} parent=1 // pred_check
      _
    $region31: #{tpu_custom_call.1} parent=1 // pred_check_branch
      %218 = sbr.rel (0) target = $region33
    $region32: #{tpu_custom_call.1} parent=1 // pred_region
      %s220 = ssub.s32 256, 256
      %221 = vsyncadd [#allocation9], %s220
      %s222 = sshll.u32 [#allocation10], 4
      %s223 = int_to_ptr.vmem [resolvable:$true] %s222
      %228 = dma.vmem_to_hbm [thread:$0]  %s223, 256, %s5, [#allocation9], 128, 128, 8
    $region33: #{tpu_custom_call.1} parent=1 // pred_fallthru
      _
    // Predicated region
    $region34: #{tpu_custom_call.1} parent=1 // pred_check
      _
    $region35: #{tpu_custom_call.1} parent=1 // pred_check_branch
      %230 = sbr.rel (0) target = $region37
    $region36: #{tpu_custom_call.1} parent=1 // pred_region
      %231 = dma.done [#allocation4], 256
    $region37: #{tpu_custom_call.1} parent=1 // pred_fallthru
      _
    // Predicated region
    $region38: #{tpu_custom_call.1} parent=1 // pred_check
      _
    $region39: #{tpu_custom_call.1} parent=1 // pred_check_branch
      %233 = sbr.rel (0) target = $region41
    $region40: #{tpu_custom_call.1} parent=1 // pred_region
      %234 = dma.done [#allocation9], 256
    $region41: #{tpu_custom_call.1} parent=1 // pred_fallthru
      _
    // Predicated region
    $region42: #{tpu_custom_call.1} parent=1 // pred_check
      _
    $region43: #{tpu_custom_call.1} parent=1 // pred_check_branch
      %236 = sbr.rel (0) target = $region45
    $region44: #{tpu_custom_call.1} parent=1 // pred_region
      %237 = dma.done [#allocation9], 256
    $region45: #{tpu_custom_call.1} parent=1 // pred_fallthru
      _
    %238 = vsyncpa [#allocation3], 1
    %239 = vsyncpa [#allocation6], 1
    %240 = vsyncpa [#allocation4], 1
    %241 = vsyncpa [#allocation9], 1

</llo_original>
